<compile_context>
chip_gen: v5e
topology: v5e:2x2
jax: 0.10.0
libtpu: 0.0.40
codegen_flags: <defaults>
</compile_context>

<pallas_src>
import functools
import math

import jax
import jax.numpy as jnp
import numpy as np
from jax import lax
from jax.experimental import pallas as pl
from jax.experimental.pallas import tpu as pltpu


def spatial_attn_kernel(w_ref, col_ref, x_ref, o_ref,
                        sum_ref, max_ref, stack_ref,
                        *, H, W, HW_pad, C, TC, BN, sub, needs_cmask):
    # w_ref:     SMEM (18,) f32. taps 0..8 -> avg map (pre-scaled by 1/C),
    #            taps 9..17 -> max map.
    # col_ref:   VMEM (1, HW_pad) int32, w-coordinate of every flat position.
    # x_ref:     VMEM (BN, TC, HW_pad) channel chunk for BN batch elements.
    # o_ref:     VMEM (BN, 1, HW_pad) output block (lane-dense).
    # sum_ref:   VMEM (BN, 8, HW_pad) f32 running channel partial sums.
    # max_ref:   VMEM (BN, 8, HW_pad) f32 running channel partial maxes.
    # stack_ref: VMEM (2*BN, HW_pad) f32 stacked avg/max maps for the conv.
    c_idx = pl.program_id(1)
    num_c = pl.num_programs(1)

    @pl.when(c_idx == 0)
    def _init():
        sum_ref[...] = jnp.zeros_like(sum_ref)
        max_ref[...] = jnp.full_like(max_ref, -jnp.inf)

    num_full = TC // sub                 # full native-sublane strips per chunk
    tail = TC - num_full * sub           # only possible when TC == C (1 chunk)
    groups = sub // 8                    # 8-row vreg groups per strip

    if needs_cmask:
        # Rows >= valid_rows in the (padded) last chunk are undefined; mask them.
        valid_rows = jnp.minimum(TC, C - c_idx * TC)

    for b in range(BN):
        if num_full > 0:
            def strip_body(s, carry, _b=b):
                acc_s, acc_m = carry
                start = pl.multiple_of(s * sub, sub)
                xs = x_ref[_b, pl.ds(start, sub), :].astype(jnp.float32)
                if needs_cmask:
                    row = start + lax.broadcasted_iota(jnp.int32, (sub, HW_pad), 0)
                    ok = row < valid_rows
                    xs_s = jnp.where(ok, xs, 0.0)
                    xs_m = jnp.where(ok, xs, -jnp.inf)
                else:
                    xs_s = xs
                    xs_m = xs
                # Fold the strip into 8-sublane accumulators (pure VPU adds).
                for g in range(groups):
                    acc_s = acc_s + xs_s[g * 8:(g + 1) * 8]
                    acc_m = jnp.maximum(acc_m, xs_m[g * 8:(g + 1) * 8])
                return acc_s, acc_m

            init = (jnp.zeros((8, HW_pad), jnp.float32),
                    jnp.full((8, HW_pad), -jnp.inf, jnp.float32))
            acc_s, acc_m = lax.fori_loop(0, num_full, strip_body, init,
                                         unroll=True)
            sum_ref[b] = sum_ref[b] + acc_s
            max_ref[b] = jnp.maximum(max_ref[b], acc_m)

        if tail > 0:
            # Tail strip (< sub rows); only when the whole C fits in one chunk.
            xt = x_ref[b, pl.ds(num_full * sub, tail), :].astype(jnp.float32)
            sum_ref[b, 0:1, :] = sum_ref[b, 0:1, :] + jnp.sum(
                xt, axis=0, keepdims=True)
            max_ref[b, 0:1, :] = jnp.maximum(
                max_ref[b, 0:1, :], jnp.max(xt, axis=0, keepdims=True))

    @pl.when(c_idx == num_c - 1)
    def _finalize():
        # One cross-sublane reduce per map; stack rows [0:BN]=avg, [BN:2BN]=max
        # so every roll below shifts all maps in a single XLU op.
        for b in range(BN):
            stack_ref[b:b + 1, :] = jnp.sum(sum_ref[b], axis=0, keepdims=True)
            stack_ref[BN + b:BN + b + 1, :] = jnp.max(
                max_ref[b], axis=0, keepdims=True)
        maps = stack_ref[...]                                   # (2*BN, HW_pad)

        flat = lax.broadcasted_iota(jnp.int32, (1, HW_pad), 1)  # flat index
        col = col_ref[...]                                      # w coordinate

        # Boundary masks reproducing the conv's zero padding (keyed on the
        # OUTPUT position, so wrapped / pad-lane reads are always neutralized).
        h_ok = {-1: flat >= W, 0: None, 1: flat < (H - 1) * W}
        w_ok = {-1: col >= 1, 0: None, 1: col < (W - 1)}

        acc = jnp.zeros((BN, HW_pad), jnp.float32)
        for kh in range(3):
            dh = kh - 1
            for kw in range(3):
                dw = kw - 1
                s = dh * W + dw
                sh = (-s) % HW_pad                 # shifted[i] = map[i + s]
                rolled = maps if sh == 0 else pltpu.roll(maps, shift=sh, axis=1)
                tap = (w_ref[kh * 3 + kw] * rolled[:BN]
                       + w_ref[9 + kh * 3 + kw] * rolled[BN:])
                mask = h_ok[dh]
                if w_ok[dw] is not None:
                    mask = w_ok[dw] if mask is None else (mask & w_ok[dw])
                if mask is not None:
                    tap = jnp.where(mask, tap, 0.0)
                acc = acc + tap

        sig = jax.nn.sigmoid(acc).astype(o_ref.dtype)           # (BN, HW_pad)
        for b in range(BN):
            o_ref[b, 0:1, :] = sig[b:b + 1]


def _round_up(x, m):
    return ((x + m - 1) // m) * m


def _vmem_capacity_bytes(default=64 * 1024 * 1024):
    try:
        info = pltpu.get_tpu_info()
        cap = getattr(info, "vmem_capacity_bytes", None)
        if cap:
            return int(cap)
    except Exception:
        pass
    return default


def _pick_channel_chunk(C, HW_pad, itemsize, align, budget_bytes):
    """Channel rows per chunk: whole C if it fits (legal as the full dim even
    when not 8-aligned), otherwise the largest dtype-aligned chunk under the
    budget.  Non-dividing C is handled in-kernel with a row mask."""
    row_bytes = HW_pad * itemsize
    if C <= align or C * row_bytes <= budget_bytes:
        return C
    return max(align, (budget_bytes // row_bytes) // align * align)


def _vmem_estimate(BN, TC, HW_pad, in_item, out_item):
    x_blocks = 2 * BN * TC * HW_pad * in_item          # double-buffered input
    out_blocks = 2 * BN * 8 * HW_pad * out_item        # output block (padded)
    col_blocks = 2 * 8 * HW_pad * 4                    # col-index block
    scratch = BN * (8 + 8 + 2) * HW_pad * 4            # sum + max + stacked maps
    temps = (4 * max(2 * BN, 8) + 4 * 8) * HW_pad * 4  # strip/epilogue temps
    return x_blocks + out_blocks + col_blocks + scratch + temps


def _pick_batch_block(N, TC, HW_pad, in_item, out_item, budget_bytes, cap):
    for bn in range(N, 0, -1):
        if N % bn:
            continue
        if bn * TC * HW_pad * in_item > budget_bytes:
            continue
        if _vmem_estimate(bn, TC, HW_pad, in_item, out_item) > cap // 2:
            continue
        return bn
    return 1


def spatial_attention(x, conv_weight, *, c_chunk_budget_bytes=None):
    """x: (N, C, H, W); conv_weight: (1, 2, 3, 3).  Returns (N, 1, H, W)."""
    N, C, H, W = x.shape
    HW = H * W
    HW_pad = _round_up(HW, 128)                 # lane-dense (unmasked vst)
    in_item = x.dtype.itemsize
    out_item = in_item
    align = {1: 32, 2: 16, 4: 8}.get(in_item, 8)  # dtype-native sublane tile

    cap = _vmem_capacity_bytes()
    if c_chunk_budget_bytes is None:
        # ~16 MiB chunks on v5e/v6e (128 MiB VMEM), ~8 MiB on v7x (64 MiB).
        budget = max(2 << 20, min(16 << 20, cap // 8))
    else:
        budget = int(c_chunk_budget_bytes)

    TC = _pick_channel_chunk(C, HW_pad, in_item, align, budget)
    num_chunks = pl.cdiv(C, TC)
    needs_cmask = (C % TC) != 0
    # Partial chunks only occur with dtype-aligned TC (never with TC == C).
    assert (not needs_cmask) or (TC % align == 0)

    BN = _pick_batch_block(N, TC, HW_pad, in_item, out_item, budget, cap)

    # Lane-dense flattened view, zero-padded on the lane dim if needed.
    x_flat = x.reshape(N, C, HW)
    if HW_pad != HW:
        x_flat = jnp.pad(x_flat, ((0, 0), (0, 0), (0, HW_pad - HW)))

    # Fold 1/C into the avg-channel taps so the kernel uses a plain sum.
    w2 = conv_weight.reshape(2, 9).astype(jnp.float32)
    w_flat = jnp.concatenate([w2[0] / C, w2[1]])              # (18,)

    # Pre-computed w coordinate per flat position (avoids int mod in-kernel).
    col_idx = (jnp.arange(HW_pad, dtype=jnp.int32) % W).reshape(1, HW_pad)

    kernel = functools.partial(
        spatial_attn_kernel, H=H, W=W, HW_pad=HW_pad, C=C, TC=TC, BN=BN,
        sub=align, needs_cmask=needs_cmask)

    est = _vmem_estimate(BN, TC, HW_pad, in_item, out_item)
    vmem_limit = int(min(max(2 * est + (4 << 20), 32 << 20), (cap * 3) // 4))

    cost = pl.CostEstimate(
        flops=int(3 * N * C * HW + 40 * N * HW),
        transcendentals=int(N * HW),
        bytes_accessed=int(N * C * HW * in_item + N * HW * out_item + 72))

    out = pl.pallas_call(
        kernel,
        out_shape=jax.ShapeDtypeStruct((N, 1, HW_pad), x.dtype),
        grid_spec=pltpu.PrefetchScalarGridSpec(
            num_scalar_prefetch=1,                      # conv taps -> SMEM
            grid=(N // BN, num_chunks),
            in_specs=[
                pl.BlockSpec((1, HW_pad), lambda n, c, w: (0, 0)),
                pl.BlockSpec((BN, TC, HW_pad), lambda n, c, w: (n, c, 0)),
            ],
            out_specs=pl.BlockSpec((BN, 1, HW_pad), lambda n, c, w: (n, 0, 0)),
            scratch_shapes=[
                pltpu.VMEM((BN, 8, HW_pad), jnp.float32),   # running sums
                pltpu.VMEM((BN, 8, HW_pad), jnp.float32),   # running maxes
                pltpu.VMEM((2 * BN, HW_pad), jnp.float32),  # stacked avg/max
            ]),
        compiler_params=pltpu.CompilerParams(
            dimension_semantics=("parallel", "arbitrary"),
            vmem_limit_bytes=vmem_limit),
        cost_estimate=cost,
    )(w_flat, col_idx, x_flat)

    return out[:, :, :HW].reshape(N, 1, H, W)


def spatial_attention_ref(x, conv_weight):
    """Pure-JAX reference matching the PyTorch module (computed in f32)."""
    xf = x.astype(jnp.float32)
    avg_out = jnp.mean(xf, axis=1, keepdims=True)
    max_out = jnp.max(xf, axis=1, keepdims=True)
    cat = jnp.concatenate([avg_out, max_out], axis=1)         # (N, 2, H, W)
    y = lax.conv_general_dilated(
        cat, conv_weight.astype(jnp.float32),
        window_strides=(1, 1), padding=((1, 1), (1, 1)),
        dimension_numbers=("NCHW", "OIHW", "NCHW"))
    return jax.nn.sigmoid(y)


if __name__ == "__main__":
    key = jax.random.PRNGKey(0)
    kx1, kx2, kx3, kw = jax.random.split(key, 4)

    # Conv2d(2, 1, 3, bias=False) default init: uniform in +-1/sqrt(fan_in).
    fan_in = 2 * 3 * 3
    bound = 1.0 / math.sqrt(fan_in)
    conv_weight = jax.random.uniform(
        kw, (1, 2, 3, 3), dtype=jnp.float32, minval=-bound, maxval=bound)

    # Case 1: small f32, single chunk, batch-blocked (BN=2), tail-only strip.
    x1 = jax.random.normal(kx1, (2, 4, 16, 16), dtype=jnp.float32)
    out1 = jax.block_until_ready(spatial_attention(x1, conv_weight))
    ref1 = spatial_attention_ref(x1, conv_weight)
    assert out1.shape == (2, 1, 16, 16)
    np.testing.assert_allclose(np.asarray(out1), np.asarray(ref1),
                               rtol=1e-5, atol=1e-5)

    # Case 2: f32 with C a multiple of the sublane tile -> unrolled strip loop.
    x2 = jax.random.normal(kx2, (1, 32, 16, 16), dtype=jnp.float32)
    out2 = jax.block_until_ready(spatial_attention(x2, conv_weight))
    ref2 = spatial_attention_ref(x2, conv_weight)
    np.testing.assert_allclose(np.asarray(out2), np.asarray(ref2),
                               rtol=1e-5, atol=1e-5)

    # Case 3: bf16, forced tiny chunk budget -> multi-chunk accumulation with a
    # masked partial last chunk, plus lane padding (HW=64 -> 128).
    x3 = jax.random.normal(kx3, (2, 40, 8, 8),
                           dtype=jnp.float32).astype(jnp.bfloat16)
    out3 = jax.block_until_ready(
        spatial_attention(x3, conv_weight, c_chunk_budget_bytes=16 * 128 * 2))
    ref3 = spatial_attention_ref(x3, conv_weight)
    np.testing.assert_allclose(np.asarray(out3, dtype=np.float32),
                               np.asarray(ref3), rtol=2e-2, atol=1e-2)

    print("KERNEL_OK")
</pallas_src>

<mosaic_0001>
module attributes {stable_mosaic.version = 11 : i64} {
  func.func @spatial_attn_kernel(%arg0: i32, %arg1: i32, %arg2: memref<18xf32, #tpu.memory_space<smem>>, %arg3: memref<1x256xi32, #tpu.memory_space<vmem>>, %arg4: memref<2x4x256xf32, #tpu.memory_space<vmem>>, %arg5: memref<2x1x256xf32, #tpu.memory_space<vmem>>, %arg6: memref<2x8x256xf32, #tpu.memory_space<vmem>>, %arg7: memref<2x8x256xf32, #tpu.memory_space<vmem>>, %arg8: memref<4x256xf32, #tpu.memory_space<vmem>>) attributes {dimension_semantics = [#tpu.dimension_semantics<parallel>, #tpu.dimension_semantics<arbitrary>], iteration_bounds = array<i64: 1, 1>, scalar_prefetch = 1 : i64, scratch_operands = 3 : i64, tpu.core_type = #tpu.core_type<tc>, window_params = [{pipeline_mode = #tpu.pipeline_mode<synchronous>, transform_indices = @transform_0, window_bounds = array<i64: 1, 256>}, {transform_indices = @transform_1, window_bounds = array<i64: 2, 4, 256>}, {transform_indices = @transform_2, window_bounds = array<i64: 2, 1, 256>}]} {
    %c0_i32 = arith.constant 0 : i32
    %0 = arith.cmpi eq, %arg1, %c0_i32 : i32
    %1 = arith.extui %0 : i1 to i32
    %c0_i32_0 = arith.constant 0 : i32
    %2 = arith.cmpi ne, %1, %c0_i32_0 : i32
    scf.if %2 {
      %cst_34 = arith.constant 0.000000e+00 : f32
      %42 = vector.broadcast %cst_34 : f32 to vector<2x8x256xf32>
      %c0_35 = arith.constant 0 : index
      %c0_36 = arith.constant 0 : index
      %c0_37 = arith.constant 0 : index
      %43 = vector.load %arg6[%c0_35, %c0_36, %c0_37] : memref<2x8x256xf32, #tpu.memory_space<vmem>>, vector<2x8x256xf32>
      tpu.vector_store %arg6[%c0_35, %c0_36, %c0_37], %42 {strides = array<i32>} : memref<2x8x256xf32, #tpu.memory_space<vmem>>, vector<2x8x256xf32>,
      %cst_38 = arith.constant 0xFF800000 : f32
      %44 = vector.broadcast %cst_38 : f32 to vector<2x8x256xf32>
      %c0_39 = arith.constant 0 : index
      %c0_40 = arith.constant 0 : index
      %c0_41 = arith.constant 0 : index
      %45 = vector.load %arg7[%c0_39, %c0_40, %c0_41] : memref<2x8x256xf32, #tpu.memory_space<vmem>>, vector<2x8x256xf32>
      tpu.vector_store %arg7[%c0_39, %c0_40, %c0_41], %44 {strides = array<i32>} : memref<2x8x256xf32, #tpu.memory_space<vmem>>, vector<2x8x256xf32>,
    } else {
    }
    %c0 = arith.constant 0 : index
    %c0_1 = arith.constant 0 : index
    %c0_2 = arith.constant 0 : index
    %3 = vector.load %arg4[%c0, %c0_1, %c0_2] : memref<2x4x256xf32, #tpu.memory_space<vmem>>, vector<1x4x256xf32>
    %4 = vector.shape_cast %3 : vector<1x4x256xf32> to vector<4x256xf32>
    %c0_3 = arith.constant 0 : index
    %c0_4 = arith.constant 0 : index
    %c0_5 = arith.constant 0 : index
    %5 = vector.load %arg6[%c0_3, %c0_4, %c0_5] : memref<2x8x256xf32, #tpu.memory_space<vmem>>, vector<1x1x256xf32>
    %6 = vector.shape_cast %5 : vector<1x1x256xf32> to vector<1x256xf32>
    %cst = arith.constant dense<0.000000e+00> : vector<256xf32>
    %7 = vector.multi_reduction <add>, %4, %cst [0] : vector<4x256xf32> to vector<256xf32>
    %8 = vector.shape_cast %7 : vector<256xf32> to vector<1x256xf32>
    %9 = arith.addf %6, %8 : vector<1x256xf32>
    %c0_6 = arith.constant 0 : index
    %c0_7 = arith.constant 0 : index
    %c0_8 = arith.constant 0 : index
    %10 = vector.load %arg6[%c0_6, %c0_7, %c0_8] : memref<2x8x256xf32, #tpu.memory_space<vmem>>, vector<1x1x256xf32>
    %11 = vector.shape_cast %10 : vector<1x1x256xf32> to vector<1x256xf32>
    %12 = vector.shape_cast %9 : vector<1x256xf32> to vector<1x1x256xf32>
    tpu.vector_store %arg6[%c0_6, %c0_7, %c0_8], %12 {strides = array<i32>} : memref<2x8x256xf32, #tpu.memory_space<vmem>>, vector<1x1x256xf32>,
    %c0_9 = arith.constant 0 : index
    %c0_10 = arith.constant 0 : index
    %c0_11 = arith.constant 0 : index
    %13 = vector.load %arg7[%c0_9, %c0_10, %c0_11] : memref<2x8x256xf32, #tpu.memory_space<vmem>>, vector<1x1x256xf32>
    %14 = vector.shape_cast %13 : vector<1x1x256xf32> to vector<1x256xf32>
    %cst_12 = arith.constant dense<0xFF800000> : vector<256xf32>
    %15 = vector.multi_reduction <maximumf>, %4, %cst_12 [0] : vector<4x256xf32> to vector<256xf32>
    %16 = vector.shape_cast %15 : vector<256xf32> to vector<1x256xf32>
    %17 = arith.maximumf %14, %16 : vector<1x256xf32>
    %c0_13 = arith.constant 0 : index
    %c0_14 = arith.constant 0 : index
    %c0_15 = arith.constant 0 : index
    %18 = vector.load %arg7[%c0_13, %c0_14, %c0_15] : memref<2x8x256xf32, #tpu.memory_space<vmem>>, vector<1x1x256xf32>
    %19 = vector.shape_cast %18 : vector<1x1x256xf32> to vector<1x256xf32>
    %20 = vector.shape_cast %17 : vector<1x256xf32> to vector<1x1x256xf32>
    tpu.vector_store %arg7[%c0_13, %c0_14, %c0_15], %20 {strides = array<i32>} : memref<2x8x256xf32, #tpu.memory_space<vmem>>, vector<1x1x256xf32>,
    %c1 = arith.constant 1 : index
    %c0_16 = arith.constant 0 : index
    %c0_17 = arith.constant 0 : index
    %21 = vector.load %arg4[%c1, %c0_16, %c0_17] : memref<2x4x256xf32, #tpu.memory_space<vmem>>, vector<1x4x256xf32>
    %22 = vector.shape_cast %21 : vector<1x4x256xf32> to vector<4x256xf32>
    %c1_18 = arith.constant 1 : index
    %c0_19 = arith.constant 0 : index
    %c0_20 = arith.constant 0 : index
    %23 = vector.load %arg6[%c1_18, %c0_19, %c0_20] : memref<2x8x256xf32, #tpu.memory_space<vmem>>, vector<1x1x256xf32>
    %24 = vector.shape_cast %23 : vector<1x1x256xf32> to vector<1x256xf32>
    %cst_21 = arith.constant dense<0.000000e+00> : vector<256xf32>
    %25 = vector.multi_reduction <add>, %22, %cst_21 [0] : vector<4x256xf32> to vector<256xf32>
    %26 = vector.shape_cast %25 : vector<256xf32> to vector<1x256xf32>
    %27 = arith.addf %24, %26 : vector<1x256xf32>
    %c1_22 = arith.constant 1 : index
    %c0_23 = arith.constant 0 : index
    %c0_24 = arith.constant 0 : index
    %28 = vector.load %arg6[%c1_22, %c0_23, %c0_24] : memref<2x8x256xf32, #tpu.memory_space<vmem>>, vector<1x1x256xf32>
    %29 = vector.shape_cast %28 : vector<1x1x256xf32> to vector<1x256xf32>
    %30 = vector.shape_cast %27 : vector<1x256xf32> to vector<1x1x256xf32>
    tpu.vector_store %arg6[%c1_22, %c0_23, %c0_24], %30 {strides = array<i32>} : memref<2x8x256xf32, #tpu.memory_space<vmem>>, vector<1x1x256xf32>,
    %c1_25 = arith.constant 1 : index
    %c0_26 = arith.constant 0 : index
    %c0_27 = arith.constant 0 : index
    %31 = vector.load %arg7[%c1_25, %c0_26, %c0_27] : memref<2x8x256xf32, #tpu.memory_space<vmem>>, vector<1x1x256xf32>
    %32 = vector.shape_cast %31 : vector<1x1x256xf32> to vector<1x256xf32>
    %cst_28 = arith.constant dense<0xFF800000> : vector<256xf32>
    %33 = vector.multi_reduction <maximumf>, %22, %cst_28 [0] : vector<4x256xf32> to vector<256xf32>
    %34 = vector.shape_cast %33 : vector<256xf32> to vector<1x256xf32>
    %35 = arith.maximumf %32, %34 : vector<1x256xf32>
    %c1_29 = arith.constant 1 : index
    %c0_30 = arith.constant 0 : index
    %c0_31 = arith.constant 0 : index
    %36 = vector.load %arg7[%c1_29, %c0_30, %c0_31] : memref<2x8x256xf32, #tpu.memory_space<vmem>>, vector<1x1x256xf32>
    %37 = vector.shape_cast %36 : vector<1x1x256xf32> to vector<1x256xf32>
    %38 = vector.shape_cast %35 : vector<1x256xf32> to vector<1x1x256xf32>
    tpu.vector_store %arg7[%c1_29, %c0_30, %c0_31], %38 {strides = array<i32>} : memref<2x8x256xf32, #tpu.memory_space<vmem>>, vector<1x1x256xf32>,
    %c0_i32_32 = arith.constant 0 : i32
    %39 = arith.cmpi eq, %arg1, %c0_i32_32 : i32
    %40 = arith.extui %39 : i1 to i32
    %c0_i32_33 = arith.constant 0 : i32
    %41 = arith.cmpi ne, %40, %c0_i32_33 : i32
    scf.if %41 {
      %c0_34 = arith.constant 0 : index
      %c0_35 = arith.constant 0 : index
      %c0_36 = arith.constant 0 : index
      %42 = vector.load %arg6[%c0_34, %c0_35, %c0_36] : memref<2x8x256xf32, #tpu.memory_space<vmem>>, vector<1x8x256xf32>
      %43 = vector.shape_cast %42 : vector<1x8x256xf32> to vector<8x256xf32>
      %cst_37 = arith.constant dense<0.000000e+00> : vector<256xf32>
      %44 = vector.multi_reduction <add>, %43, %cst_37 [0] : vector<8x256xf32> to vector<256xf32>
      %45 = vector.shape_cast %44 : vector<256xf32> to vector<1x256xf32>
      %c0_38 = arith.constant 0 : index
      %c0_39 = arith.constant 0 : index
      %46 = vector.load %arg8[%c0_38, %c0_39] : memref<4x256xf32, #tpu.memory_space<vmem>>, vector<1x256xf32>
      tpu.vector_store %arg8[%c0_38, %c0_39], %45 {strides = array<i32>} : memref<4x256xf32, #tpu.memory_space<vmem>>, vector<1x256xf32>,
      %c0_40 = arith.constant 0 : index
      %c0_41 = arith.constant 0 : index
      %c0_42 = arith.constant 0 : index
      %47 = vector.load %arg7[%c0_40, %c0_41, %c0_42] : memref<2x8x256xf32, #tpu.memory_space<vmem>>, vector<1x8x256xf32>
      %48 = vector.shape_cast %47 : vector<1x8x256xf32> to vector<8x256xf32>
      %cst_43 = arith.constant dense<0xFF800000> : vector<256xf32>
      %49 = vector.multi_reduction <maximumf>, %48, %cst_43 [0] : vector<8x256xf32> to vector<256xf32>
      %50 = vector.shape_cast %49 : vector<256xf32> to vector<1x256xf32>
      %c2 = arith.constant 2 : index
      %c0_44 = arith.constant 0 : index
      %51 = vector.load %arg8[%c2, %c0_44] : memref<4x256xf32, #tpu.memory_space<vmem>>, vector<1x256xf32>
      tpu.vector_store %arg8[%c2, %c0_44], %50 {strides = array<i32>} : memref<4x256xf32, #tpu.memory_space<vmem>>, vector<1x256xf32>,
      %c1_45 = arith.constant 1 : index
      %c0_46 = arith.constant 0 : index
      %c0_47 = arith.constant 0 : index
      %52 = vector.load %arg6[%c1_45, %c0_46, %c0_47] : memref<2x8x256xf32, #tpu.memory_space<vmem>>, vector<1x8x256xf32>
      %53 = vector.shape_cast %52 : vector<1x8x256xf32> to vector<8x256xf32>
      %cst_48 = arith.constant dense<0.000000e+00> : vector<256xf32>
      %54 = vector.multi_reduction <add>, %53, %cst_48 [0] : vector<8x256xf32> to vector<256xf32>
      %55 = vector.shape_cast %54 : vector<256xf32> to vector<1x256xf32>
      %c1_49 = arith.constant 1 : index
      %c0_50 = arith.constant 0 : index
      %56 = vector.load %arg8[%c1_49, %c0_50] : memref<4x256xf32, #tpu.memory_space<vmem>>, vector<1x256xf32>
      tpu.vector_store %arg8[%c1_49, %c0_50], %55 {strides = array<i32>} : memref<4x256xf32, #tpu.memory_space<vmem>>, vector<1x256xf32>,
      %c1_51 = arith.constant 1 : index
      %c0_52 = arith.constant 0 : index
      %c0_53 = arith.constant 0 : index
      %57 = vector.load %arg7[%c1_51, %c0_52, %c0_53] : memref<2x8x256xf32, #tpu.memory_space<vmem>>, vector<1x8x256xf32>
      %58 = vector.shape_cast %57 : vector<1x8x256xf32> to vector<8x256xf32>
      %cst_54 = arith.constant dense<0xFF800000> : vector<256xf32>
      %59 = vector.multi_reduction <maximumf>, %58, %cst_54 [0] : vector<8x256xf32> to vector<256xf32>
      %60 = vector.shape_cast %59 : vector<256xf32> to vector<1x256xf32>
      %c3 = arith.constant 3 : index
      %c0_55 = arith.constant 0 : index
      %61 = vector.load %arg8[%c3, %c0_55] : memref<4x256xf32, #tpu.memory_space<vmem>>, vector<1x256xf32>
      tpu.vector_store %arg8[%c3, %c0_55], %60 {strides = array<i32>} : memref<4x256xf32, #tpu.memory_space<vmem>>, vector<1x256xf32>,
      %c0_56 = arith.constant 0 : index
      %c0_57 = arith.constant 0 : index
      %62 = vector.load %arg8[%c0_56, %c0_57] : memref<4x256xf32, #tpu.memory_space<vmem>>, vector<4x256xf32>
      %63 = tpu.iota {dimensions = array<i32: 1>} : vector<1x256xi32>
      %c0_58 = arith.constant 0 : index
      %c0_59 = arith.constant 0 : index
      %64 = vector.load %arg3[%c0_58, %c0_59] : memref<1x256xi32, #tpu.memory_space<vmem>>, vector<1x256xi32>
      %c16_i32 = arith.constant 16 : i32
      %65 = vector.broadcast %c16_i32 : i32 to vector<1x256xi32>
      %66 = arith.cmpi sge, %63, %65 : vector<1x256xi32>
      %c240_i32 = arith.constant 240 : i32
      %67 = vector.broadcast %c240_i32 : i32 to vector<1x256xi32>
      %68 = arith.cmpi slt, %63, %67 : vector<1x256xi32>
      %c1_i32 = arith.constant 1 : i32
      %69 = vector.broadcast %c1_i32 : i32 to vector<1x256xi32>
      %70 = arith.cmpi sge, %64, %69 : vector<1x256xi32>
      %c15_i32 = arith.constant 15 : i32
      %71 = vector.broadcast %c15_i32 : i32 to vector<1x256xi32>
      %72 = arith.cmpi slt, %64, %71 : vector<1x256xi32>
      %cst_60 = arith.constant 0.000000e+00 : f32
      %73 = vector.broadcast %cst_60 : f32 to vector<2x256xf32>
      %c17_i32 = arith.constant 17 : i32
      %74 = tpu.dynamic_rotate %62 by %c17_i32 dim 1 : vector<4x256xf32>, i32 -> vector<4x256xf32>
      %c0_61 = arith.constant 0 : index
      %75 = memref.load %arg2[%c0_61] : memref<18xf32, #tpu.memory_space<smem>>
      %76 = vector.extract_strided_slice %74 {offsets = [0, 0], sizes = [2, 256], strides = [1, 1]} : vector<4x256xf32> to vector<2x256xf32>
      %77 = vector.broadcast %75 : f32 to vector<2x256xf32>
      %78 = arith.mulf %77, %76 : vector<2x256xf32>
      %c9 = arith.constant 9 : index
      %79 = memref.load %arg2[%c9] : memref<18xf32, #tpu.memory_space<smem>>
      %80 = vector.extract_strided_slice %74 {offsets = [2, 0], sizes = [2, 256], strides = [1, 1]} : vector<4x256xf32> to vector<2x256xf32>
      %81 = vector.broadcast %79 : f32 to vector<2x256xf32>
      %82 = arith.mulf %81, %80 : vector<2x256xf32>
      %83 = arith.addf %78, %82 : vector<2x256xf32>
      %84 = arith.andi %66, %70 : vector<1x256xi1>
      %cst_62 = arith.constant 0.000000e+00 : f32
      %85 = vector.shape_cast %84 : vector<1x256xi1> to vector<1x256xi1>
      %86 = vector.broadcast %85 : vector<1x256xi1> to vector<2x256xi1>
      %87 = vector.broadcast %cst_62 : f32 to vector<2x256xf32>
      %88 = arith.select %86, %83, %87 : vector<2x256xi1>, vector<2x256xf32>
      %89 = arith.addf %73, %88 : vector<2x256xf32>
      %c16_i32_63 = arith.constant 16 : i32
      %90 = tpu.dynamic_rotate %62 by %c16_i32_63 dim 1 : vector<4x256xf32>, i32 -> vector<4x256xf32>
      %c1_64 = arith.constant 1 : index
      %91 = memref.load %arg2[%c1_64] : memref<18xf32, #tpu.memory_space<smem>>
      %92 = vector.extract_strided_slice %90 {offsets = [0, 0], sizes = [2, 256], strides = [1, 1]} : vector<4x256xf32> to vector<2x256xf32>
      %93 = vector.broadcast %91 : f32 to vector<2x256xf32>
      %94 = arith.mulf %93, %92 : vector<2x256xf32>
      %c10 = arith.constant 10 : index
      %95 = memref.load %arg2[%c10] : memref<18xf32, #tpu.memory_space<smem>>
      %96 = vector.extract_strided_slice %90 {offsets = [2, 0], sizes = [2, 256], strides = [1, 1]} : vector<4x256xf32> to vector<2x256xf32>
      %97 = vector.broadcast %95 : f32 to vector<2x256xf32>
      %98 = arith.mulf %97, %96 : vector<2x256xf32>
      %99 = arith.addf %94, %98 : vector<2x256xf32>
      %cst_65 = arith.constant 0.000000e+00 : f32
      %100 = vector.shape_cast %66 : vector<1x256xi1> to vector<1x256xi1>
      %101 = vector.broadcast %100 : vector<1x256xi1> to vector<2x256xi1>
      %102 = vector.broadcast %cst_65 : f32 to vector<2x256xf32>
      %103 = arith.select %101, %99, %102 : vector<2x256xi1>, vector<2x256xf32>
      %104 = arith.addf %89, %103 : vector<2x256xf32>
      %c15_i32_66 = arith.constant 15 : i32
      %105 = tpu.dynamic_rotate %62 by %c15_i32_66 dim 1 : vector<4x256xf32>, i32 -> vector<4x256xf32>
      %c2_67 = arith.constant 2 : index
      %106 = memref.load %arg2[%c2_67] : memref<18xf32, #tpu.memory_space<smem>>
      %107 = vector.extract_strided_slice %105 {offsets = [0, 0], sizes = [2, 256], strides = [1, 1]} : vector<4x256xf32> to vector<2x256xf32>
      %108 = vector.broadcast %106 : f32 to vector<2x256xf32>
      %109 = arith.mulf %108, %107 : vector<2x256xf32>
      %c11 = arith.constant 11 : index
      %110 = memref.load %arg2[%c11] : memref<18xf32, #tpu.memory_space<smem>>
      %111 = vector.extract_strided_slice %105 {offsets = [2, 0], sizes = [2, 256], strides = [1, 1]} : vector<4x256xf32> to vector<2x256xf32>
      %112 = vector.broadcast %110 : f32 to vector<2x256xf32>
      %113 = arith.mulf %112, %111 : vector<2x256xf32>
      %114 = arith.addf %109, %113 : vector<2x256xf32>
      %115 = arith.andi %66, %72 : vector<1x256xi1>
      %cst_68 = arith.constant 0.000000e+00 : f32
      %116 = vector.shape_cast %115 : vector<1x256xi1> to vector<1x256xi1>
      %117 = vector.broadcast %116 : vector<1x256xi1> to vector<2x256xi1>
      %118 = vector.broadcast %cst_68 : f32 to vector<2x256xf32>
      %119 = arith.select %117, %114, %118 : vector<2x256xi1>, vector<2x256xf32>
      %120 = arith.addf %104, %119 : vector<2x256xf32>
      %c1_i32_69 = arith.constant 1 : i32
      %121 = tpu.dynamic_rotate %62 by %c1_i32_69 dim 1 : vector<4x256xf32>, i32 -> vector<4x256xf32>
      %c3_70 = arith.constant 3 : index
      %122 = memref.load %arg2[%c3_70] : memref<18xf32, #tpu.memory_space<smem>>
      %123 = vector.extract_strided_slice %121 {offsets = [0, 0], sizes = [2, 256], strides = [1, 1]} : vector<4x256xf32> to vector<2x256xf32>
      %124 = vector.broadcast %122 : f32 to vector<2x256xf32>
      %125 = arith.mulf %124, %123 : vector<2x256xf32>
      %c12 = arith.constant 12 : index
      %126 = memref.load %arg2[%c12] : memref<18xf32, #tpu.memory_space<smem>>
      %127 = vector.extract_strided_slice %121 {offsets = [2, 0], sizes = [2, 256], strides = [1, 1]} : vector<4x256xf32> to vector<2x256xf32>
      %128 = vector.broadcast %126 : f32 to vector<2x256xf32>
      %129 = arith.mulf %128, %127 : vector<2x256xf32>
      %130 = arith.addf %125, %129 : vector<2x256xf32>
      %cst_71 = arith.constant 0.000000e+00 : f32
      %131 = vector.shape_cast %70 : vector<1x256xi1> to vector<1x256xi1>
      %132 = vector.broadcast %131 : vector<1x256xi1> to vector<2x256xi1>
      %133 = vector.broadcast %cst_71 : f32 to vector<2x256xf32>
      %134 = arith.select %132, %130, %133 : vector<2x256xi1>, vector<2x256xf32>
      %135 = arith.addf %120, %134 : vector<2x256xf32>
      %c4 = arith.constant 4 : index
      %136 = memref.load %arg2[%c4] : memref<18xf32, #tpu.memory_space<smem>>
      %137 = vector.extract_strided_slice %62 {offsets = [0, 0], sizes = [2, 256], strides = [1, 1]} : vector<4x256xf32> to vector<2x256xf32>
      %138 = vector.broadcast %136 : f32 to vector<2x256xf32>
      %139 = arith.mulf %138, %137 : vector<2x256xf32>
      %c13 = arith.constant 13 : index
      %140 = memref.load %arg2[%c13] : memref<18xf32, #tpu.memory_space<smem>>
      %141 = vector.extract_strided_slice %62 {offsets = [2, 0], sizes = [2, 256], strides = [1, 1]} : vector<4x256xf32> to vector<2x256xf32>
      %142 = vector.broadcast %140 : f32 to vector<2x256xf32>
      %143 = arith.mulf %142, %141 : vector<2x256xf32>
      %144 = arith.addf %139, %143 : vector<2x256xf32>
      %145 = arith.addf %135, %144 : vector<2x256xf32>
      %c255_i32 = arith.constant 255 : i32
      %146 = tpu.dynamic_rotate %62 by %c255_i32 dim 1 : vector<4x256xf32>, i32 -> vector<4x256xf32>
      %c5 = arith.constant 5 : index
      %147 = memref.load %arg2[%c5] : memref<18xf32, #tpu.memory_space<smem>>
      %148 = vector.extract_strided_slice %146 {offsets = [0, 0], sizes = [2, 256], strides = [1, 1]} : vector<4x256xf32> to vector<2x256xf32>
      %149 = vector.broadcast %147 : f32 to vector<2x256xf32>
      %150 = arith.mulf %149, %148 : vector<2x256xf32>
      %c14 = arith.constant 14 : index
      %151 = memref.load %arg2[%c14] : memref<18xf32, #tpu.memory_space<smem>>
      %152 = vector.extract_strided_slice %146 {offsets = [2, 0], sizes = [2, 256], strides = [1, 1]} : vector<4x256xf32> to vector<2x256xf32>
      %153 = vector.broadcast %151 : f32 to vector<2x256xf32>
      %154 = arith.mulf %153, %152 : vector<2x256xf32>
      %155 = arith.addf %150, %154 : vector<2x256xf32>
      %cst_72 = arith.constant 0.000000e+00 : f32
      %156 = vector.shape_cast %72 : vector<1x256xi1> to vector<1x256xi1>
      %157 = vector.broadcast %156 : vector<1x256xi1> to vector<2x256xi1>
      %158 = vector.broadcast %cst_72 : f32 to vector<2x256xf32>
      %159 = arith.select %157, %155, %158 : vector<2x256xi1>, vector<2x256xf32>
      %160 = arith.addf %145, %159 : vector<2x256xf32>
      %c241_i32 = arith.constant 241 : i32
      %161 = tpu.dynamic_rotate %62 by %c241_i32 dim 1 : vector<4x256xf32>, i32 -> vector<4x256xf32>
      %c6 = arith.constant 6 : index
      %162 = memref.load %arg2[%c6] : memref<18xf32, #tpu.memory_space<smem>>
      %163 = vector.extract_strided_slice %161 {offsets = [0, 0], sizes = [2, 256], strides = [1, 1]} : vector<4x256xf32> to vector<2x256xf32>
      %164 = vector.broadcast %162 : f32 to vector<2x256xf32>
      %165 = arith.mulf %164, %163 : vector<2x256xf32>
      %c15 = arith.constant 15 : index
      %166 = memref.load %arg2[%c15] : memref<18xf32, #tpu.memory_space<smem>>
      %167 = vector.extract_strided_slice %161 {offsets = [2, 0], sizes = [2, 256], strides = [1, 1]} : vector<4x256xf32> to vector<2x256xf32>
      %168 = vector.broadcast %166 : f32 to vector<2x256xf32>
      %169 = arith.mulf %168, %167 : vector<2x256xf32>
      %170 = arith.addf %165, %169 : vector<2x256xf32>
      %171 = arith.andi %68, %70 : vector<1x256xi1>
      %cst_73 = arith.constant 0.000000e+00 : f32
      %172 = vector.shape_cast %171 : vector<1x256xi1> to vector<1x256xi1>
      %173 = vector.broadcast %172 : vector<1x256xi1> to vector<2x256xi1>
      %174 = vector.broadcast %cst_73 : f32 to vector<2x256xf32>
      %175 = arith.select %173, %170, %174 : vector<2x256xi1>, vector<2x256xf32>
      %176 = arith.addf %160, %175 : vector<2x256xf32>
      %c240_i32_74 = arith.constant 240 : i32
      %177 = tpu.dynamic_rotate %62 by %c240_i32_74 dim 1 : vector<4x256xf32>, i32 -> vector<4x256xf32>
      %c7 = arith.constant 7 : index
      %178 = memref.load %arg2[%c7] : memref<18xf32, #tpu.memory_space<smem>>
      %179 = vector.extract_strided_slice %177 {offsets = [0, 0], sizes = [2, 256], strides = [1, 1]} : vector<4x256xf32> to vector<2x256xf32>
      %180 = vector.broadcast %178 : f32 to vector<2x256xf32>
      %181 = arith.mulf %180, %179 : vector<2x256xf32>
      %c16 = arith.constant 16 : index
      %182 = memref.load %arg2[%c16] : memref<18xf32, #tpu.memory_space<smem>>
      %183 = vector.extract_strided_slice %177 {offsets = [2, 0], sizes = [2, 256], strides = [1, 1]} : vector<4x256xf32> to vector<2x256xf32>
      %184 = vector.broadcast %182 : f32 to vector<2x256xf32>
      %185 = arith.mulf %184, %183 : vector<2x256xf32>
      %186 = arith.addf %181, %185 : vector<2x256xf32>
      %cst_75 = arith.constant 0.000000e+00 : f32
      %187 = vector.shape_cast %68 : vector<1x256xi1> to vector<1x256xi1>
      %188 = vector.broadcast %187 : vector<1x256xi1> to vector<2x256xi1>
      %189 = vector.broadcast %cst_75 : f32 to vector<2x256xf32>
      %190 = arith.select %188, %186, %189 : vector<2x256xi1>, vector<2x256xf32>
      %191 = arith.addf %176, %190 : vector<2x256xf32>
      %c239_i32 = arith.constant 239 : i32
      %192 = tpu.dynamic_rotate %62 by %c239_i32 dim 1 : vector<4x256xf32>, i32 -> vector<4x256xf32>
      %c8 = arith.constant 8 : index
      %193 = memref.load %arg2[%c8] : memref<18xf32, #tpu.memory_space<smem>>
      %194 = vector.extract_strided_slice %192 {offsets = [0, 0], sizes = [2, 256], strides = [1, 1]} : vector<4x256xf32> to vector<2x256xf32>
      %195 = vector.broadcast %193 : f32 to vector<2x256xf32>
      %196 = arith.mulf %195, %194 : vector<2x256xf32>
      %c17 = arith.constant 17 : index
      %197 = memref.load %arg2[%c17] : memref<18xf32, #tpu.memory_space<smem>>
      %198 = vector.extract_strided_slice %192 {offsets = [2, 0], sizes = [2, 256], strides = [1, 1]} : vector<4x256xf32> to vector<2x256xf32>
      %199 = vector.broadcast %197 : f32 to vector<2x256xf32>
      %200 = arith.mulf %199, %198 : vector<2x256xf32>
      %201 = arith.addf %196, %200 : vector<2x256xf32>
      %202 = arith.andi %68, %72 : vector<1x256xi1>
      %cst_76 = arith.constant 0.000000e+00 : f32
      %203 = vector.shape_cast %202 : vector<1x256xi1> to vector<1x256xi1>
      %204 = vector.broadcast %203 : vector<1x256xi1> to vector<2x256xi1>
      %205 = vector.broadcast %cst_76 : f32 to vector<2x256xf32>
      %206 = arith.select %204, %201, %205 : vector<2x256xi1>, vector<2x256xf32>
      %207 = arith.addf %191, %206 : vector<2x256xf32>
      %208 = arith.negf %207 : vector<2x256xf32>
      %209 = math.exp %208 : vector<2x256xf32>
      %cst_77 = arith.constant 1.000000e+00 : f32
      %210 = vector.broadcast %cst_77 : f32 to vector<2x256xf32>
      %211 = arith.addf %210, %209 : vector<2x256xf32>
      %212 = arith.divf %210, %211 : vector<2x256xf32>
      %213 = vector.extract_strided_slice %212 {offsets = [0, 0], sizes = [1, 256], strides = [1, 1]} : vector<2x256xf32> to vector<1x256xf32>
      %c0_78 = arith.constant 0 : index
      %c0_79 = arith.constant 0 : index
      %c0_80 = arith.constant 0 : index
      %214 = vector.load %arg5[%c0_78, %c0_79, %c0_80] : memref<2x1x256xf32, #tpu.memory_space<vmem>>, vector<1x1x256xf32>
      %215 = vector.shape_cast %214 : vector<1x1x256xf32> to vector<1x256xf32>
      %216 = vector.shape_cast %213 : vector<1x256xf32> to vector<1x1x256xf32>
      tpu.vector_store %arg5[%c0_78, %c0_79, %c0_80], %216 {strides = array<i32>} : memref<2x1x256xf32, #tpu.memory_space<vmem>>, vector<1x1x256xf32>,
      %217 = vector.extract_strided_slice %212 {offsets = [1, 0], sizes = [1, 256], strides = [1, 1]} : vector<2x256xf32> to vector<1x256xf32>
      %c1_81 = arith.constant 1 : index
      %c0_82 = arith.constant 0 : index
      %c0_83 = arith.constant 0 : index
      %218 = vector.load %arg5[%c1_81, %c0_82, %c0_83] : memref<2x1x256xf32, #tpu.memory_space<vmem>>, vector<1x1x256xf32>
      %219 = vector.shape_cast %218 : vector<1x1x256xf32> to vector<1x256xf32>
      %220 = vector.shape_cast %217 : vector<1x256xf32> to vector<1x1x256xf32>
      tpu.vector_store %arg5[%c1_81, %c0_82, %c0_83], %220 {strides = array<i32>} : memref<2x1x256xf32, #tpu.memory_space<vmem>>, vector<1x1x256xf32>,
    } else {
    }
    return
  }
  func.func @transform_0(%arg0: i32, %arg1: i32, %arg2: memref<18xf32, #tpu.memory_space<smem>>) -> (i32, i32) {
    %c0_i32 = arith.constant 0 : i32
    %c0_i32_0 = arith.constant 0 : i32
    %c0_i32_1 = arith.constant 0 : i32
    return %c0_i32, %c0_i32_0 : i32, i32
  }
  func.func @transform_1(%arg0: i32, %arg1: i32, %arg2: memref<18xf32, #tpu.memory_space<smem>>) -> (i32, i32, i32) {
    %c0_i32 = arith.constant 0 : i32
    %c0_i32_0 = arith.constant 0 : i32
    return %arg0, %arg1, %c0_i32 : i32, i32, i32
  }
  func.func @transform_2(%arg0: i32, %arg1: i32, %arg2: memref<18xf32, #tpu.memory_space<smem>>) -> (i32, i32, i32) {
    %c0_i32 = arith.constant 0 : i32
    %c0_i32_0 = arith.constant 0 : i32
    %c0_i32_1 = arith.constant 0 : i32
    return %arg0, %c0_i32, %c0_i32_0 : i32, i32, i32
  }
}

</mosaic_0001>

<llo_original>
// kernel: tpu_custom_call.1
$region0: #{tpu_custom_call.1}
  #allocation0 [shape = 'u32[]', space=smem, size = 0x4, offset = 0x4, fixed_abs, tag = 'smem constant byte address 0x4 - core index']
  #allocation1 [shape = 'u32[72,128]{1,0:T(1,128)}', space=vmem, size = 0x9000, scoped, tag = 'internal scratch']
  #allocation2 [shape = 'f32[2,8,256]{2,1,0:T(8,128)}', space=vmem, size = 0x4000, scoped, tag = 'scratch operand']
  #allocation3 [shape = 'f32[2,8,256]{2,1,0:T(8,128)}', space=vmem, size = 0x4000, scoped, tag = 'scratch operand']
  #allocation4 [shape = 'f32[4,256]{1,0:T(4,128)}', space=vmem, size = 0x1000, scoped, tag = 'scratch operand']
  #allocation5 [shape = 's32[1]{0}', space=sflag, size = 0x4, scoped, tag = 'scoped memory for tpu_custom_call.1']
  #allocation6 [shape = 'u8[512]{0}', space=smem, size = 0x200, scoped, tag = 'prefetched SMEM operand 0']
  %s0 = inlined_call_operand.hbm [shape: f32[18], index: 0, kind: input, shape index: {}]
  %s1 = inlined_call_operand.hbm [shape: s32[1,256], index: 1, kind: input, shape index: {}]
  %s2 = inlined_call_operand.hbm [shape: f32[2,4,256], index: 2, kind: input, shape index: {}]
  %s3 = inlined_call_operand.hbm [shape: f32[2,1,256], index: 3, kind: output, shape index: {}]
  %s4 = sld [smem:[#allocation0]]
  $region34: #{tpu_custom_call.1} parent=0
    _
  %s6 = ssub.s32 1, %s4
  %s7 = scalar_select 0, %s6, %s4
  %s9 = sshll.u32 %s0, 4
  %s10 = int_to_ptr.hbm [resolvable:$true] %s9
  %12 = dma.hbm_to_smem %s10, 16, [#allocation6], [#allocation5]
  %14 = dma.done [#allocation5], 16
  %15 = sfence
  $region1: #{tpu_custom_call.1} parent=0
    #allocation7 [shape = 'u8[1024]{0}', space=vmem, size = 0x400, scoped, tag = 'input window, operand 1, single buffered']
    #allocation8 [shape = 's32[1]{0}', space=sflag, size = 0x4, scoped, tag = 'scoped memory for tpu_custom_call.1']
    #allocation9 [shape = 's32[1]{0}', space=sflag, size = 0x4, scoped, tag = 'scoped memory for tpu_custom_call.1']
    #allocation10 [shape = 'u8[8192]{0}', space=vmem, size = 0x2000, scoped, tag = 'input window, operand 2, single buffered']
    #allocation11 [shape = 's32[1]{0}', space=sflag, size = 0x4, scoped, tag = 'scoped memory for tpu_custom_call.1']
    #allocation12 [shape = 'u8[2048]{0}', space=vmem, size = 0x800, scoped, tag = 'output window, operand 0, single buffered']
    %16 = vsyncpa [#allocation8], 0
    %17 = vsyncpa [#allocation11], 0
    %18 = vsyncpa [#allocation9], 0
    // Predicated region
    $region2: #{tpu_custom_call.1} parent=1 // pred_check
      _
    $region3: #{tpu_custom_call.1} parent=1 // pred_check_branch
      %20 = sbr.rel (0) target = $region5
    $region4: #{tpu_custom_call.1} parent=1 // pred_region
      %22 = vsyncadd [#allocation8], 0
      %s24 = sshll.u32 %s1, 4
      %s25 = int_to_ptr.hbm [resolvable:$true] %s24
      %s26 = sshll.u32 [#allocation7], 4
      %s27 = int_to_ptr.vmem [resolvable:$true] %s26
      %29 = dma.hbm_to_vmem [thread:$0]  %s25, 32, %s27, [#allocation8]
    $region5: #{tpu_custom_call.1} parent=1 // pred_fallthru
      _
    // Predicated region
    $region6: #{tpu_custom_call.1} parent=1 // pred_check
      _
    $region7: #{tpu_custom_call.1} parent=1 // pred_check_branch
      %31 = sbr.rel (0) target = $region9
    $region8: #{tpu_custom_call.1} parent=1 // pred_region
      %33 = vsyncadd [#allocation11], 0
      %s34 = sshll.u32 %s2, 4
      %s35 = int_to_ptr.hbm [resolvable:$true] %s34
      %s36 = sshll.u32 [#allocation10], 4
      %s37 = int_to_ptr.vmem [resolvable:$true] %s36
      %42 = dma.hbm_to_vmem [thread:$0]  %s35, 256, %s37, [#allocation11], 128, 128, 8
    $region9: #{tpu_custom_call.1} parent=1 // pred_fallthru
      _
    // Predicated region
    $region10: #{tpu_custom_call.1} parent=1 // pred_check
      _
    $region11: #{tpu_custom_call.1} parent=1 // pred_check_branch
      %44 = sbr.rel (0) target = $region13
    $region12: #{tpu_custom_call.1} parent=1 // pred_region
      %46 = dma.done [#allocation8], 32
    $region13: #{tpu_custom_call.1} parent=1 // pred_fallthru
      _
    // Predicated region
    $region14: #{tpu_custom_call.1} parent=1 // pred_check
      _
    $region15: #{tpu_custom_call.1} parent=1 // pred_check_branch
      %48 = sbr.rel (0) target = $region17
    $region16: #{tpu_custom_call.1} parent=1 // pred_region
      %50 = dma.done [#allocation11], 256
    $region17: #{tpu_custom_call.1} parent=1 // pred_fallthru
      _
    %p51 = scmp.eq.s32.totalorder 0, 0
    // Predicated region
    $region18: #{tpu_custom_call.1} parent=1 // pred_check
      %p52 = pneg %p51
    $region19: #{tpu_custom_call.1} parent=1 // pred_check_branch
      %54 = sbr.rel (%p52) target = $region21
    $region20: #{tpu_custom_call.1} parent=1 // pred_region
      %55 = vst [vmem:[#allocation2] sm:$0xff] 0.0
      %56 = vst [vmem:[#allocation2 + $0x8] sm:$0xff] 0.0
      %57 = vst [vmem:[#allocation2 + $0x10] sm:$0xff] 0.0
      %58 = vst [vmem:[#allocation2 + $0x18] sm:$0xff] 0.0
      %59 = vst [vmem:[#allocation3] sm:$0xff] -inf
      %60 = vst [vmem:[#allocation3 + $0x8] sm:$0xff] -inf
      %61 = vst [vmem:[#allocation3 + $0x10] sm:$0xff] -inf
      %62 = vst [vmem:[#allocation3 + $0x18] sm:$0xff] -inf
    $region21: #{tpu_custom_call.1} parent=1 // pred_fallthru
      _
    %v63 = vld [vmem:[#allocation10] sm:$0xff]
    %v64 = vld [vmem:[#allocation2] ss:$8 sm:$0x3]
    %66 = vst [vmem:[#allocation1] ss:$2 sm:$0xff] %v63
    %v67 = vld.sshfl [vmem:[#allocation1] sm:$0xff pattern:$0x75316420]
    %v68 = vld.sshfl [vmem:[#allocation1 + $0x8] sm:$0xff pattern:$0x75316420]
    %vm71 = vcmask 1043456
    %v72 = vsel %vm71, %v67, 0.0
    %v73 = vrot.slane %v72, 4
    %v74 = vadd.f32 %v72, %v73
    %v75 = vrot.slane %v74, 2
    %v76 = vadd.f32 %v74, %v75
    %v77 = vrot.slane %v76, 1
    %v78 = vadd.f32 %v76, %v77
    %v79 = vsel %vm71, %v68, 0.0
    %v80 = vrot.slane %v79, 4
    %v81 = vadd.f32 %v79, %v80
    %v82 = vrot.slane %v81, 2
    %v83 = vadd.f32 %v81, %v82
    %v84 = vrot.slane %v83, 1
    %v85 = vadd.f32 %v83, %v84
    %v88 = vrot.slane %v85, 7
    %vm89 = vcmask 1040384
    %v90 = vsel %vm89, %v78, %v88
    %v92 = vadd.f32 %v64, %v90
    %v93 = vlaneseq
    %vm94 = vcmp.ge.s32.totalorder %v93, 0
    %vm95 = vcmp.lt.s32.totalorder %v93, 256
    %vm96 = vmand %vm94, %vm95
    %97 = vst.msk [vmem:[#allocation2] ss:$8 sm:$0x3] %vm96, %v92
    %98 = vst.msk [vmem:[#allocation2] ss:$8 sm:$0x0] %vm96, %v92
    %v99 = vld [vmem:[#allocation3] ss:$8 sm:$0x3]
    %100 = vst [vmem:[#allocation1] ss:$2 sm:$0xff] %v63
    %v101 = vld.sshfl [vmem:[#allocation1] sm:$0xff pattern:$0x75316420]
    %v102 = vld.sshfl [vmem:[#allocation1 + $0x8] sm:$0xff pattern:$0x75316420]
    %v105 = vsel %vm71, %v101, -inf
    %v106 = vrot.slane %v105, 4
    %v107 = vmax.f32 %v105, %v106
    %v108 = vrot.slane %v107, 2
    %v109 = vmax.f32 %v107, %v108
    %v110 = vrot.slane %v109, 1
    %v111 = vmax.f32 %v109, %v110
    %v112 = vsel %vm71, %v102, -inf
    %v113 = vrot.slane %v112, 4
    %v114 = vmax.f32 %v112, %v113
    %v115 = vrot.slane %v114, 2
    %v116 = vmax.f32 %v114, %v115
    %v117 = vrot.slane %v116, 1
    %v118 = vmax.f32 %v116, %v117
    %v121 = vrot.slane %v118, 7
    %v122 = vsel %vm89, %v111, %v121
    %v124 = vmax.f32 %v99, %v122
    %125 = vst.msk [vmem:[#allocation3] ss:$8 sm:$0x3] %vm96, %v124
    %126 = vst.msk [vmem:[#allocation3] ss:$8 sm:$0x0] %vm96, %v124
    %s127 = scalar_lea.vmem [#allocation10], 8
    %v128 = vld [vmem:[%s127] sm:$0xff]
    %s129 = scalar_lea.vmem [#allocation2], 16
    %v130 = vld [vmem:[%s129] ss:$8 sm:$0x3]
    %132 = vst [vmem:[#allocation1] ss:$2 sm:$0xff] %v128
    %v133 = vld.sshfl [vmem:[#allocation1] sm:$0xff pattern:$0x75316420]
    %v134 = vld.sshfl [vmem:[#allocation1 + $0x8] sm:$0xff pattern:$0x75316420]
    %v137 = vsel %vm71, %v133, 0.0
    %v138 = vrot.slane %v137, 4
    %v139 = vadd.f32 %v137, %v138
    %v140 = vrot.slane %v139, 2
    %v141 = vadd.f32 %v139, %v140
    %v142 = vrot.slane %v141, 1
    %v143 = vadd.f32 %v141, %v142
    %v144 = vsel %vm71, %v134, 0.0
    %v145 = vrot.slane %v144, 4
    %v146 = vadd.f32 %v144, %v145
    %v147 = vrot.slane %v146, 2
    %v148 = vadd.f32 %v146, %v147
    %v149 = vrot.slane %v148, 1
    %v150 = vadd.f32 %v148, %v149
    %v153 = vrot.slane %v150, 7
    %v154 = vsel %vm89, %v143, %v153
    %v156 = vadd.f32 %v130, %v154
    %157 = vst.msk [vmem:[%s129] ss:$8 sm:$0x3] %vm96, %v156
    %158 = vst.msk [vmem:[%s129] ss:$8 sm:$0x0] %vm96, %v156
    %s159 = scalar_lea.vmem [#allocation3], 16
    %v160 = vld [vmem:[%s159] ss:$8 sm:$0x3]
    %161 = vst [vmem:[#allocation1] ss:$2 sm:$0xff] %v128
    %v162 = vld.sshfl [vmem:[#allocation1] sm:$0xff pattern:$0x75316420]
    %v163 = vld.sshfl [vmem:[#allocation1 + $0x8] sm:$0xff pattern:$0x75316420]
    %v166 = vsel %vm71, %v162, -inf
    %v167 = vrot.slane %v166, 4
    %v168 = vmax.f32 %v166, %v167
    %v169 = vrot.slane %v168, 2
    %v170 = vmax.f32 %v168, %v169
    %v171 = vrot.slane %v170, 1
    %v172 = vmax.f32 %v170, %v171
    %v173 = vsel %vm71, %v163, -inf
    %v174 = vrot.slane %v173, 4
    %v175 = vmax.f32 %v173, %v174
    %v176 = vrot.slane %v175, 2
    %v177 = vmax.f32 %v175, %v176
    %v178 = vrot.slane %v177, 1
    %v179 = vmax.f32 %v177, %v178
    %v182 = vrot.slane %v179, 7
    %v183 = vsel %vm89, %v172, %v182
    %v185 = vmax.f32 %v160, %v183
    %186 = vst.msk [vmem:[%s159] ss:$8 sm:$0x3] %vm96, %v185
    %187 = vst.msk [vmem:[%s159] ss:$8 sm:$0x0] %vm96, %v185
    // Predicated region
    $region22: #{tpu_custom_call.1} parent=1 // pred_check
      %p188 = pneg %p51
    $region23: #{tpu_custom_call.1} parent=1 // pred_check_branch
      %190 = sbr.rel (%p188) target = $region25
    $region24: #{tpu_custom_call.1} parent=1 // pred_region
      %v191 = vld [vmem:[#allocation2] sm:$0xff]
      %v192 = vld [vmem:[#allocation2 + $0x8] sm:$0xff]
      %v193 = vrot.slane %v191, 4
      %v194 = vadd.f32 %v191, %v193
      %v195 = vrot.slane %v194, 2
      %v196 = vadd.f32 %v194, %v195
      %v197 = vrot.slane %v196, 1
      %v198 = vadd.f32 %v196, %v197
      %v199 = vrot.slane %v192, 4
      %v200 = vadd.f32 %v192, %v199
      %v201 = vrot.slane %v200, 2
      %v202 = vadd.f32 %v200, %v201
      %v203 = vrot.slane %v202, 1
      %v204 = vadd.f32 %v202, %v203
      %v207 = vrot.slane %v204, 7
      %v208 = vsel %vm89, %v198, %v207
      %210 = vst.msk [vmem:[#allocation4] ss:$4 sm:$0x3] %vm96, %v208
      %v211 = vld [vmem:[#allocation3] sm:$0xff]
      %v212 = vld [vmem:[#allocation3 + $0x8] sm:$0xff]
      %v213 = vrot.slane %v211, 4
      %v214 = vmax.f32 %v211, %v213
      %v215 = vrot.slane %v214, 2
      %v216 = vmax.f32 %v214, %v215
      %v217 = vrot.slane %v216, 1
      %v218 = vmax.f32 %v216, %v217
      %v219 = vrot.slane %v212, 4
      %v220 = vmax.f32 %v212, %v219
      %v221 = vrot.slane %v220, 2
      %v222 = vmax.f32 %v220, %v221
      %v223 = vrot.slane %v222, 1
      %v224 = vmax.f32 %v222, %v223
      %v227 = vrot.slane %v224, 7
      %v228 = vsel %vm89, %v218, %v227
      %s230 = scalar_lea.vmem [#allocation4], 2
      %231 = vst.msk [vmem:[%s230] ss:$4 sm:$0x3] %vm96, %v228
      %v232 = vld [vmem:[%s129] sm:$0xff]
      %v233 = vld [vmem:[%s129 + $0x8] sm:$0xff]
      %v234 = vrot.slane %v232, 4
      %v235 = vadd.f32 %v232, %v234
      %v236 = vrot.slane %v235, 2
      %v237 = vadd.f32 %v235, %v236
      %v238 = vrot.slane %v237, 1
      %v239 = vadd.f32 %v237, %v238
      %v240 = vrot.slane %v233, 4
      %v241 = vadd.f32 %v233, %v240
      %v242 = vrot.slane %v241, 2
      %v243 = vadd.f32 %v241, %v242
      %v244 = vrot.slane %v243, 1
      %v245 = vadd.f32 %v243, %v244
      %v248 = vrot.slane %v245, 7
      %v249 = vsel %vm89, %v239, %v248
      %s251 = scalar_lea.vmem [#allocation4], 1
      %252 = vst.msk [vmem:[%s251] ss:$4 sm:$0x3] %vm96, %v249
      %v253 = vld [vmem:[%s159] sm:$0xff]
      %v254 = vld [vmem:[%s159 + $0x8] sm:$0xff]
      %v255 = vrot.slane %v253, 4
      %v256 = vmax.f32 %v253, %v255
      %v257 = vrot.slane %v256, 2
      %v258 = vmax.f32 %v256, %v257
      %v259 = vrot.slane %v258, 1
      %v260 = vmax.f32 %v258, %v259
      %v261 = vrot.slane %v254, 4
      %v262 = vmax.f32 %v254, %v261
      %v263 = vrot.slane %v262, 2
      %v264 = vmax.f32 %v262, %v263
      %v265 = vrot.slane %v264, 1
      %v266 = vmax.f32 %v264, %v265
      %v269 = vrot.slane %v266, 7
      %v270 = vsel %vm89, %v260, %v269
      %s272 = scalar_lea.vmem [#allocation4], 3
      %273 = vst.msk [vmem:[%s272] ss:$4 sm:$0x3] %vm96, %v270
      %v274 = vld [vmem:[#allocation4] sm:$0xff]
      %v275 = vlaneseq
      %v276 = vand.u32 %v275, 127
      %v277 = vadd.s32 %v276, 128
      %v278 = vld [vmem:[#allocation7] sm:$0x3]
      %vm279 = vcmp.ge.s32.totalorder %v276, 16
      %vm280 = vcmp.ge.s32.totalorder %v277, 16
      %vm281 = vcmp.lt.s32.totalorder %v276, 240
      %vm282 = vcmp.lt.s32.totalorder %v277, 240
      %vm283 = vcmp.ge.s32.totalorder %v278, 1
      %vm284 = vcmp.lt.s32.totalorder %v278, 15
      %286 = vst [vmem:[#allocation1] ss:$2 sm:$0xff] %v274
      %v287 = vld.sshfl [vmem:[#allocation1] sm:$0xff pattern:$0x75316420]
      %v288 = vld.sshfl [vmem:[#allocation1 + $0x8] sm:$0xff pattern:$0x75316420]
      %291 = vrot.lane.b32.xlu0 %v287, 17
      %v292 = vpop.permute.xlu0 %291
      %293 = vrot.lane.b32.xlu0 %v288, 17
      %v294 = vpop.permute.xlu0 %293
      %vm295 = vcmp.lt.s32.totalorder %v276, 17
      %v296 = vsel %vm295, %v292, %v294
      %v297 = vsel %vm295, %v294, %v292
      %s298 = sld [smem:[#allocation6]]
      %v299 = vstv %s298
      %v300 = vmul.f32 %v299, %v297
      %v301 = vmul.f32 %v299, %v296
      %s302 = sld [smem:[#allocation6 + $0x9]]
      %v303 = vstv %s302
      %v304 = vmul.f32 %v303, %v297
      %v305 = vmul.f32 %v303, %v296
      %v308 = vrot.slane %v304, 2
      %v309 = vrot.slane %v305, 2
      %v312 = vadd.f32 %v300, %v308
      %v313 = vadd.f32 %v301, %v309
      %v314 = vsel %vm283, 1, 0
      %v315 = vperm.slane %v314, 0
      %v316 = vperm.slane %v314, 1
      %vm317 = vcmp.ne.s32.totalorder %v315, 0
      %vm318 = vcmp.ne.s32.totalorder %v316, 0
      %vm319 = vmand %vm279, %vm317
      %vm320 = vmand %vm280, %vm318
      %v321 = vsel %vm319, 1, 0
      %v322 = vsel %vm320, 1, 0
      %v323 = vperm.slane %v321, 0
      %v324 = vperm.slane %v322, 0
      %vm325 = vcmp.eq.s32.totalorder %v323, 1
      %vm326 = vcmp.eq.s32.totalorder %v324, 1
      %v327 = vsel %vm325, %v312, 0.0
      %v328 = vsel %vm326, %v313, 0.0
      %v329 = vadd.f32 %v327, 0.0
      %v330 = vadd.f32 %v328, 0.0
      %331 = vst [vmem:[#allocation1] ss:$2 sm:$0xff] %v274
      %v332 = vld.sshfl [vmem:[#allocation1] sm:$0xff pattern:$0x75316420]
      %v333 = vld.sshfl [vmem:[#allocation1 + $0x8] sm:$0xff pattern:$0x75316420]
      %336 = vrot.lane.b32.xlu0 %v332, 16
      %v337 = vpop.permute.xlu0 %336
      %338 = vrot.lane.b32.xlu0 %v333, 16
      %v339 = vpop.permute.xlu0 %338
      %vm340 = vcmp.lt.s32.totalorder %v276, 16
      %v341 = vsel %vm340, %v337, %v339
      %v342 = vsel %vm340, %v339, %v337
      %s343 = sld [smem:[#allocation6 + $0x1]]
      %v344 = vstv %s343
      %v345 = vmul.f32 %v344, %v342
      %v346 = vmul.f32 %v344, %v341
      %s347 = sld [smem:[#allocation6 + $0xa]]
      %v348 = vstv %s347
      %v349 = vmul.f32 %v348, %v342
      %v350 = vmul.f32 %v348, %v341
      %v353 = vrot.slane %v349, 2
      %v354 = vrot.slane %v350, 2
      %v357 = vadd.f32 %v345, %v353
      %v358 = vadd.f32 %v346, %v354
      %v359 = vsel %vm279, 1, 0
      %v360 = vsel %vm280, 1, 0
      %vm361 = vcmp.eq.s32.totalorder %v359, 1
      %vm362 = vcmp.eq.s32.totalorder %v360, 1
      %v363 = vsel %vm361, %v357, 0.0
      %v364 = vsel %vm362, %v358, 0.0
      %v365 = vadd.f32 %v329, %v363
      %v366 = vadd.f32 %v330, %v364
      %367 = vst [vmem:[#allocation1] ss:$2 sm:$0xff] %v274
      %v368 = vld.sshfl [vmem:[#allocation1] sm:$0xff pattern:$0x75316420]
      %v369 = vld.sshfl [vmem:[#allocation1 + $0x8] sm:$0xff pattern:$0x75316420]
      %372 = vrot.lane.b32.xlu0 %v368, 15
      %v373 = vpop.permute.xlu0 %372
      %374 = vrot.lane.b32.xlu0 %v369, 15
      %v375 = vpop.permute.xlu0 %374
      %vm376 = vcmp.lt.s32.totalorder %v276, 15
      %v377 = vsel %vm376, %v373, %v375
      %v378 = vsel %vm376, %v375, %v373
      %s379 = sld [smem:[#allocation6 + $0x2]]
      %v380 = vstv %s379
      %v381 = vmul.f32 %v380, %v378
      %v382 = vmul.f32 %v380, %v377
      %s383 = sld [smem:[#allocation6 + $0xb]]
      %v384 = vstv %s383
      %v385 = vmul.f32 %v384, %v378
      %v386 = vmul.f32 %v384, %v377
      %v389 = vrot.slane %v385, 2
      %v390 = vrot.slane %v386, 2
      %v393 = vadd.f32 %v381, %v389
      %v394 = vadd.f32 %v382, %v390
      %v395 = vsel %vm284, 1, 0
      %v396 = vperm.slane %v395, 0
      %v397 = vperm.slane %v395, 1
      %vm398 = vcmp.ne.s32.totalorder %v396, 0
      %vm399 = vcmp.ne.s32.totalorder %v397, 0
      %vm400 = vmand %vm279, %vm398
      %vm401 = vmand %vm280, %vm399
      %v402 = vsel %vm400, 1, 0
      %v403 = vsel %vm401, 1, 0
      %v404 = vperm.slane %v402, 0
      %v405 = vperm.slane %v403, 0
      %vm406 = vcmp.eq.s32.totalorder %v404, 1
      %vm407 = vcmp.eq.s32.totalorder %v405, 1
      %v408 = vsel %vm406, %v393, 0.0
      %v409 = vsel %vm407, %v394, 0.0
      %v410 = vadd.f32 %v365, %v408
      %v411 = vadd.f32 %v366, %v409
      %412 = vst [vmem:[#allocation1] ss:$2 sm:$0xff] %v274
      %v413 = vld.sshfl [vmem:[#allocation1] sm:$0xff pattern:$0x75316420]
      %v414 = vld.sshfl [vmem:[#allocation1 + $0x8] sm:$0xff pattern:$0x75316420]
      %417 = vrot.lane.b32.xlu0 %v413, 1
      %v418 = vpop.permute.xlu0 %417
      %419 = vrot.lane.b32.xlu0 %v414, 1
      %v420 = vpop.permute.xlu0 %419
      %vm421 = vcmp.lt.s32.totalorder %v276, 1
      %v422 = vsel %vm421, %v418, %v420
      %v423 = vsel %vm421, %v420, %v418
      %s424 = sld [smem:[#allocation6 + $0x3]]
      %v425 = vstv %s424
      %v426 = vmul.f32 %v425, %v423
      %v427 = vmul.f32 %v425, %v422
      %s428 = sld [smem:[#allocation6 + $0xc]]
      %v429 = vstv %s428
      %v430 = vmul.f32 %v429, %v423
      %v431 = vmul.f32 %v429, %v422
      %v434 = vrot.slane %v430, 2
      %v435 = vrot.slane %v431, 2
      %v438 = vadd.f32 %v426, %v434
      %v439 = vadd.f32 %v427, %v435
      %vm440 = vcmp.eq.s32.totalorder %v315, 1
      %vm441 = vcmp.eq.s32.totalorder %v316, 1
      %v442 = vsel %vm440, %v438, 0.0
      %v443 = vsel %vm441, %v439, 0.0
      %v444 = vadd.f32 %v410, %v442
      %v445 = vadd.f32 %v411, %v443
      %s446 = sld [smem:[#allocation6 + $0x4]]
      %v447 = vstv %s446
      %v448 = vmul.f32 %v447, %v274
      %s449 = sld [smem:[#allocation6 + $0xd]]
      %v450 = vstv %s449
      %v451 = vmul.f32 %v450, %v274
      %v453 = vrot.slane %v451, 6
      %v454 = vrot.slane %v453, 4
      %v456 = vadd.f32 %v448, %v454
      %458 = vst [vmem:[#allocation1] ss:$2 sm:$0xff] %v456
      %v459 = vld.sshfl [vmem:[#allocation1] sm:$0xff pattern:$0x75316420]
      %v460 = vld.sshfl [vmem:[#allocation1 + $0x8] sm:$0xff pattern:$0x75316420]
      %v463 = vadd.f32 %v444, %v459
      %v464 = vadd.f32 %v445, %v460
      %465 = vst [vmem:[#allocation1] ss:$2 sm:$0xff] %v274
      %v466 = vld.sshfl [vmem:[#allocation1] sm:$0xff pattern:$0x75316420]
      %v467 = vld.sshfl [vmem:[#allocation1 + $0x8] sm:$0xff pattern:$0x75316420]
      %470 = vrot.lane.b32.xlu0 %v466, 127
      %v471 = vpop.permute.xlu0 %470
      %472 = vrot.lane.b32.xlu0 %v467, 127
      %v473 = vpop.permute.xlu0 %472
      %vm474 = vcmp.lt.s32.totalorder %v276, 127
      %v475 = vsel %vm474, %v471, %v473
      %v476 = vsel %vm474, %v473, %v471
      %s477 = sld [smem:[#allocation6 + $0x5]]
      %v478 = vstv %s477
      %v479 = vmul.f32 %v478, %v475
      %v480 = vmul.f32 %v478, %v476
      %s481 = sld [smem:[#allocation6 + $0xe]]
      %v482 = vstv %s481
      %v483 = vmul.f32 %v482, %v475
      %v484 = vmul.f32 %v482, %v476
      %v487 = vrot.slane %v483, 2
      %v488 = vrot.slane %v484, 2
      %v491 = vadd.f32 %v479, %v487
      %v492 = vadd.f32 %v480, %v488
      %vm493 = vcmp.eq.s32.totalorder %v396, 1
      %vm494 = vcmp.eq.s32.totalorder %v397, 1
      %v495 = vsel %vm493, %v491, 0.0
      %v496 = vsel %vm494, %v492, 0.0
      %v497 = vadd.f32 %v463, %v495
      %v498 = vadd.f32 %v464, %v496
      %499 = vst [vmem:[#allocation1] ss:$2 sm:$0xff] %v274
      %v500 = vld.sshfl [vmem:[#allocation1] sm:$0xff pattern:$0x75316420]
      %v501 = vld.sshfl [vmem:[#allocation1 + $0x8] sm:$0xff pattern:$0x75316420]
      %504 = vrot.lane.b32.xlu0 %v500, 113
      %v505 = vpop.permute.xlu0 %504
      %506 = vrot.lane.b32.xlu0 %v501, 113
      %v507 = vpop.permute.xlu0 %506
      %vm508 = vcmp.lt.s32.totalorder %v276, 113
      %v509 = vsel %vm508, %v505, %v507
      %v510 = vsel %vm508, %v507, %v505
      %s511 = sld [smem:[#allocation6 + $0x6]]
      %v512 = vstv %s511
      %v513 = vmul.f32 %v512, %v509
      %v514 = vmul.f32 %v512, %v510
      %s515 = sld [smem:[#allocation6 + $0xf]]
      %v516 = vstv %s515
      %v517 = vmul.f32 %v516, %v509
      %v518 = vmul.f32 %v516, %v510
      %v521 = vrot.slane %v517, 2
      %v522 = vrot.slane %v518, 2
      %v525 = vadd.f32 %v513, %v521
      %v526 = vadd.f32 %v514, %v522
      %vm527 = vmand %vm281, %vm317
      %vm528 = vmand %vm282, %vm318
      %v529 = vsel %vm527, 1, 0
      %v530 = vsel %vm528, 1, 0
      %v531 = vperm.slane %v529, 0
      %v532 = vperm.slane %v530, 0
      %vm533 = vcmp.eq.s32.totalorder %v531, 1
      %vm534 = vcmp.eq.s32.totalorder %v532, 1
      %v535 = vsel %vm533, %v525, 0.0
      %v536 = vsel %vm534, %v526, 0.0
      %v537 = vadd.f32 %v497, %v535
      %v538 = vadd.f32 %v498, %v536
      %539 = vst [vmem:[#allocation1] ss:$2 sm:$0xff] %v274
      %v540 = vld.sshfl [vmem:[#allocation1] sm:$0xff pattern:$0x75316420]
      %v541 = vld.sshfl [vmem:[#allocation1 + $0x8] sm:$0xff pattern:$0x75316420]
      %544 = vrot.lane.b32.xlu0 %v540, 112
      %v545 = vpop.permute.xlu0 %544
      %546 = vrot.lane.b32.xlu0 %v541, 112
      %v547 = vpop.permute.xlu0 %546
      %vm548 = vcmp.lt.s32.totalorder %v276, 112
      %v549 = vsel %vm548, %v545, %v547
      %v550 = vsel %vm548, %v547, %v545
      %s551 = sld [smem:[#allocation6 + $0x7]]
      %v552 = vstv %s551
      %v553 = vmul.f32 %v552, %v549
      %v554 = vmul.f32 %v552, %v550
      %s555 = sld [smem:[#allocation6 + $0x10]]
      %v556 = vstv %s555
      %v557 = vmul.f32 %v556, %v549
      %v558 = vmul.f32 %v556, %v550
      %v561 = vrot.slane %v557, 2
      %v562 = vrot.slane %v558, 2
      %v565 = vadd.f32 %v553, %v561
      %v566 = vadd.f32 %v554, %v562
      %v567 = vsel %vm281, 1, 0
      %v568 = vsel %vm282, 1, 0
      %vm569 = vcmp.eq.s32.totalorder %v567, 1
      %vm570 = vcmp.eq.s32.totalorder %v568, 1
      %v571 = vsel %vm569, %v565, 0.0
      %v572 = vsel %vm570, %v566, 0.0
      %v573 = vadd.f32 %v537, %v571
      %v574 = vadd.f32 %v538, %v572
      %575 = vst [vmem:[#allocation1] ss:$2 sm:$0xff] %v274
      %v576 = vld.sshfl [vmem:[#allocation1] sm:$0xff pattern:$0x75316420]
      %v577 = vld.sshfl [vmem:[#allocation1 + $0x8] sm:$0xff pattern:$0x75316420]
      %580 = vrot.lane.b32.xlu0 %v576, 111
      %v581 = vpop.permute.xlu0 %580
      %582 = vrot.lane.b32.xlu0 %v577, 111
      %v583 = vpop.permute.xlu0 %582
      %vm584 = vcmp.lt.s32.totalorder %v276, 111
      %v585 = vsel %vm584, %v581, %v583
      %v586 = vsel %vm584, %v583, %v581
      %s587 = sld [smem:[#allocation6 + $0x8]]
      %v588 = vstv %s587
      %v589 = vmul.f32 %v588, %v585
      %v590 = vmul.f32 %v588, %v586
      %s591 = sld [smem:[#allocation6 + $0x11]]
      %v592 = vstv %s591
      %v593 = vmul.f32 %v592, %v585
      %v594 = vmul.f32 %v592, %v586
      %v597 = vrot.slane %v593, 2
      %v598 = vrot.slane %v594, 2
      %v601 = vadd.f32 %v589, %v597
      %v602 = vadd.f32 %v590, %v598
      %vm603 = vmand %vm281, %vm398
      %vm604 = vmand %vm282, %vm399
      %v605 = vsel %vm603, 1, 0
      %v606 = vsel %vm604, 1, 0
      %v607 = vperm.slane %v605, 0
      %v608 = vperm.slane %v606, 0
      %vm609 = vcmp.eq.s32.totalorder %v607, 1
      %vm610 = vcmp.eq.s32.totalorder %v608, 1
      %v611 = vsel %vm609, %v601, 0.0
      %v612 = vsel %vm610, %v602, 0.0
      %v613 = vadd.f32 %v573, %v611
      %v614 = vadd.f32 %v574, %v612
      %v615 = vxor.u32 %v613, 2147483648
      %v616 = vxor.u32 %v614, 2147483648
      %v617 = vmul.f32 %v615, 1.442695
      %v618 = vpow.pop %v617
      %v619 = vmul.f32 %v616, 1.442695
      %v620 = vpow.pop %v619
      %v621 = vadd.f32 %v618, 1.0
      %v622 = vadd.f32 %v620, 1.0
      %v623 = vrcp.pop %v621
      %v624 = vmul.f32 %v621, %v623
      %v625 = vsub.f32 1.0, %v624
      %v626 = vmul.f32 %v623, %v625
      %v627 = vadd.f32 %v623, %v626
      %vm628 = vweird.f32 %v621
      %vm629 = vweird.f32 %v623
      %vm630 = vmor %vm628, %vm629
      %v631 = vsel %vm630, %v623, %v627
      %v632 = vand.u32 2147483647, %v621
      %vm633 = vcmp.eq.f32.partialorder %v632, 8.507059e+37
      %v634 = vand.u32 %v621, 2147483648
      %v635 = vor.u32 1.1754944e-38, %v634
      %v636 = vsel %vm633, %v635, %v631
      %v637 = vmul.f32 1.0, %v636
      %v638 = vrcp.pop %v622
      %v639 = vmul.f32 %v622, %v638
      %v640 = vsub.f32 1.0, %v639
      %v641 = vmul.f32 %v638, %v640
      %v642 = vadd.f32 %v638, %v641
      %vm643 = vweird.f32 %v622
      %vm644 = vweird.f32 %v638
      %vm645 = vmor %vm643, %vm644
      %v646 = vsel %vm645, %v638, %v642
      %v647 = vand.u32 2147483647, %v622
      %vm648 = vcmp.eq.f32.partialorder %v647, 8.507059e+37
      %v649 = vand.u32 %v622, 2147483648
      %v650 = vor.u32 1.1754944e-38, %v649
      %v651 = vsel %vm648, %v650, %v646
      %v652 = vmul.f32 1.0, %v651
      %v655 = vrot.slane %v652, 7
      %v656 = vsel %vm89, %v637, %v655
      %658 = vst.msk [vmem:[#allocation12] sm:$0x3] %vm96, %v656
      %659 = vst [vmem:[#allocation1] sm:$0xff] %v637
      %660 = vst [vmem:[#allocation1 + $0x9] sm:$0xff] %v652
      %s661 = scalar_lea.vmem [#allocation1], 1
      %v662 = vld [vmem:[%s661] ss:$9 sm:$0xff]
      %s664 = scalar_lea.vmem [#allocation12], 2
      %665 = vst.msk [vmem:[%s664] sm:$0x3] %vm96, %v662
    $region25: #{tpu_custom_call.1} parent=1 // pred_fallthru
      _
    // Predicated region
    $region26: #{tpu_custom_call.1} parent=1 // pred_check
      _
    $region27: #{tpu_custom_call.1} parent=1 // pred_check_branch
      %667 = sbr.rel (0) target = $region29
    $region28: #{tpu_custom_call.1} parent=1 // pred_region
      %669 = vsyncadd [#allocation9], 0
      %s670 = sshll.u32 [#allocation12], 4
      %s671 = int_to_ptr.vmem [resolvable:$true] %s670
      %s672 = sshll.u32 %s3, 4
      %s673 = int_to_ptr.hbm [resolvable:$true] %s672
      %678 = dma.vmem_to_hbm [thread:$0]  %s671, 64, %s673, [#allocation9], 32, 32, 2
    $region29: #{tpu_custom_call.1} parent=1 // pred_fallthru
      _
    // Predicated region
    $region30: #{tpu_custom_call.1} parent=1 // pred_check
      _
    $region31: #{tpu_custom_call.1} parent=1 // pred_check_branch
      %680 = sbr.rel (0) target = $region33
    $region32: #{tpu_custom_call.1} parent=1 // pred_region
      %682 = dma.done [#allocation9], 64
    $region33: #{tpu_custom_call.1} parent=1 // pred_fallthru
      _
    %683 = vsyncpa [#allocation8], 1
    %684 = vsyncpa [#allocation11], 1
    %685 = vsyncpa [#allocation9], 1

</llo_original>
